<compile_context>
chip_gen: v6e
topology: v6e:2x2x1
jax: 0.10.0
libtpu: 0.0.40
codegen_flags: <defaults>
</compile_context>

<pallas_src>
import math

import jax
import jax.numpy as jnp
from jax.experimental import pallas as pl
from jax.experimental.pallas import tpu as pltpu


def _make_qnet_kernel(num_layers):
    """Builds a kernel computing an MLP with ReLU hidden activations."""

    def kernel(*refs):
        obs_ref = refs[0]
        w_refs = refs[1:1 + num_layers]
        b_refs = refs[1 + num_layers:1 + 2 * num_layers]
        out_ref = refs[-1]

        x = obs_ref[...]
        for i in range(num_layers):
            x = jnp.dot(x, w_refs[i][...],
                        preferred_element_type=jnp.float32) + b_refs[i][...]
            if i < num_layers - 1:          # hidden activation: ReLU
                x = jnp.maximum(x, 0.0)
            # output activation: Identity
        out_ref[...] = x.astype(out_ref.dtype)
        # Note: a greedy-action consumer could fuse max/argmax over actions
        # here and emit [tb, 1], removing almost all output writeback.

    return kernel


def _pick_batch_tile(B, block_b):
    """Batch tile: big (amortize per-step overhead), multiple of 8, and >=2
    grid steps when possible so both v7x TensorCores get work."""
    if B <= 16:
        return B                              # whole batch; block == array dim
    tb = min(block_b, B)
    if tb == B:
        # Split into two tiles for megacore sharding on v7x.
        tb = (((B + 1) // 2) + 7) // 8 * 8
        tb = min(tb, B)
    else:
        tb = max(8, (tb // 8) * 8)
    return tb


def _vmem_footprint_bytes(tb, widths, itemsize=4):
    """Rough per-grid-step VMEM footprint (double-buffered obs/out, resident
    params, live f32 intermediates)."""
    f = 2 * tb * widths[0] * itemsize          # obs double buffer
    f += 2 * tb * widths[-1] * itemsize        # out double buffer
    f += 2 * sum(widths[i] * widths[i + 1] + widths[i + 1]
                 for i in range(len(widths) - 1)) * itemsize   # params
    f += 2 * tb * max(widths) * itemsize       # intermediates headroom
    return f


def mlp_qs_net_forward(obs, params, *, block_b=4096):
    """Q(s, .) for all actions in one Pallas kernel.

    obs:    [B, obs_dim]
    params: dict with "ws": tuple of [in, out] weights, "bs": tuple of [1, out]
            biases (MLP hidden layers followed by the output layer).
    Returns q-values [B, act_dim] (float32).
    """
    ws = tuple(params["ws"])
    bs = tuple(params["bs"])
    num_layers = len(ws)
    B, obs_dim = obs.shape
    act_dim = ws[-1].shape[-1]
    widths = [obs_dim] + [w.shape[-1] for w in ws]

    # Batch tile selection + VMEM clamp (v7x: 64 MiB physical / 32 MiB scoped).
    tb = _pick_batch_tile(B, block_b)
    while tb > 8 and _vmem_footprint_bytes(tb, widths) > (40 << 20):
        tb = max(8, ((tb // 2) // 8) * 8)
    grid = (pl.cdiv(B, tb),)

    est = _vmem_footprint_bytes(tb, widths)
    vmem_limit = int(min(2 * est, 48 << 20)) if est > (12 << 20) else None

    obs_spec = pl.BlockSpec((tb, obs_dim), lambda i: (i, 0))
    # Constant index_map => weights/biases are DMA'd once and stay VMEM-resident.
    w_specs = [pl.BlockSpec(w.shape, lambda i: (0, 0)) for w in ws]
    b_specs = [pl.BlockSpec(b.shape, lambda i: (0, 0)) for b in bs]
    # Unpadded, contiguous output block (last dim == full array dim).
    out_spec = pl.BlockSpec((tb, act_dim), lambda i: (i, 0))

    flops = 2 * B * sum(widths[i] * widths[i + 1] for i in range(num_layers))
    bytes_accessed = (obs.size * obs.dtype.itemsize
                      + sum(w.size * w.dtype.itemsize for w in ws)
                      + sum(b.size * b.dtype.itemsize for b in bs)
                      + B * act_dim * 4)

    q = pl.pallas_call(
        _make_qnet_kernel(num_layers),
        out_shape=jax.ShapeDtypeStruct((B, act_dim), jnp.float32),
        grid_spec=pl.GridSpec(
            grid=grid,
            in_specs=[obs_spec] + w_specs + b_specs,
            out_specs=out_spec,
        ),
        compiler_params=pltpu.CompilerParams(
            dimension_semantics=("parallel",),
            vmem_limit_bytes=vmem_limit,
        ),
        cost_estimate=pl.CostEstimate(
            flops=flops, transcendentals=0, bytes_accessed=bytes_accessed),
    )(obs, *ws, *bs)

    return q


def mlp_qs_net_reference(obs, params):
    """Pure-JAX reference matching the PyTorch forward pass."""
    x = obs
    ws, bs = params["ws"], params["bs"]
    for i in range(len(ws)):
        x = x @ ws[i] + bs[i]
        if i < len(ws) - 1:
            x = jnp.maximum(x, 0.0)
    return x


def init_params(key, obs_dim, act_dim, hidden_size, dtype=jnp.float32):
    """PyTorch-style Linear init: U(-1/sqrt(fan_in), 1/sqrt(fan_in))."""
    sizes = [obs_dim] + list(hidden_size) + [act_dim]
    ws, bs = [], []
    for j in range(len(sizes) - 1):
        fan_in, fan_out = sizes[j], sizes[j + 1]
        bound = 1.0 / math.sqrt(fan_in)
        kw = jax.random.fold_in(key, 2 * j)
        kb = jax.random.fold_in(key, 2 * j + 1)
        ws.append(jax.random.uniform(kw, (fan_in, fan_out), jnp.float32,
                                     -bound, bound).astype(dtype))
        bs.append(jax.random.uniform(kb, (1, fan_out), jnp.float32,
                                     -bound, bound).astype(dtype))
    return {"ws": tuple(ws), "bs": tuple(bs)}


if __name__ == "__main__":
    key = jax.random.PRNGKey(0)
    k_param, k_obs, k_obs2 = jax.random.split(key, 3)

    obs_dim, act_dim = 16, 4
    hidden_size = [32, 32]   # MLP: 16 -> 32 -> 32 (ReLU) -> 4 (Identity)
    params = init_params(k_param, obs_dim, act_dim, hidden_size)

    # Small batch: single tile (block == full array dims).
    B = 8
    obs = jax.random.normal(k_obs, (B, obs_dim), dtype=jnp.float32)
    q = mlp_qs_net_forward(obs, params)
    jax.block_until_ready(q)
    q_ref = mlp_qs_net_reference(obs, params)
    assert q.shape == (B, act_dim)
    assert bool(jnp.allclose(q, q_ref, atol=1e-5, rtol=1e-5)), \
        "Pallas Q-net mismatch vs pure-JAX reference (B=8)"

    # Larger batch: exercises the multi-tile / megacore-parallel path.
    B2 = 48
    obs2 = jax.random.normal(k_obs2, (B2, obs_dim), dtype=jnp.float32)
    q2 = mlp_qs_net_forward(obs2, params)
    jax.block_until_ready(q2)
    q2_ref = mlp_qs_net_reference(obs2, params)
    assert q2.shape == (B2, act_dim)
    assert bool(jnp.allclose(q2, q2_ref, atol=1e-5, rtol=1e-5)), \
        "Pallas Q-net mismatch vs pure-JAX reference (B=48)"

    print("KERNEL_OK")
</pallas_src>

<mosaic_0001>
module attributes {stable_mosaic.version = 11 : i64} {
  func.func @kernel(%arg0: i32, %arg1: memref<8x16xf32, #tpu.memory_space<vmem>>, %arg2: memref<16x32xf32, #tpu.memory_space<vmem>>, %arg3: memref<32x32xf32, #tpu.memory_space<vmem>>, %arg4: memref<32x4xf32, #tpu.memory_space<vmem>>, %arg5: memref<1x32xf32, #tpu.memory_space<vmem>>, %arg6: memref<1x32xf32, #tpu.memory_space<vmem>>, %arg7: memref<1x4xf32, #tpu.memory_space<vmem>>, %arg8: memref<8x4xf32, #tpu.memory_space<vmem>>) attributes {dimension_semantics = [#tpu.dimension_semantics<parallel>], iteration_bounds = array<i64: 1>, scalar_prefetch = 0 : i64, scratch_operands = 0 : i64, tpu.core_type = #tpu.core_type<tc>, window_params = [{transform_indices = @transform_0, window_bounds = array<i64: 8, 16>}, {pipeline_mode = #tpu.pipeline_mode<synchronous>, transform_indices = @transform_1, window_bounds = array<i64: 16, 32>}, {pipeline_mode = #tpu.pipeline_mode<synchronous>, transform_indices = @transform_2, window_bounds = array<i64: 32, 32>}, {pipeline_mode = #tpu.pipeline_mode<synchronous>, transform_indices = @transform_3, window_bounds = array<i64: 32, 4>}, {pipeline_mode = #tpu.pipeline_mode<synchronous>, transform_indices = @transform_4, window_bounds = array<i64: 1, 32>}, {pipeline_mode = #tpu.pipeline_mode<synchronous>, transform_indices = @transform_5, window_bounds = array<i64: 1, 32>}, {pipeline_mode = #tpu.pipeline_mode<synchronous>, transform_indices = @transform_6, window_bounds = array<i64: 1, 4>}, {transform_indices = @transform_7, window_bounds = array<i64: 8, 4>}]} {
    %c0 = arith.constant 0 : index
    %c0_0 = arith.constant 0 : index
    %0 = vector.load %arg1[%c0, %c0_0] : memref<8x16xf32, #tpu.memory_space<vmem>>, vector<8x16xf32>
    %c0_1 = arith.constant 0 : index
    %c0_2 = arith.constant 0 : index
    %1 = vector.load %arg2[%c0_1, %c0_2] : memref<16x32xf32, #tpu.memory_space<vmem>>, vector<16x32xf32>
    %cst = arith.constant dense<0.000000e+00> : vector<8x32xf32>
    %2 = tpu.matmul %0, %1, %cst {dimension_numbers = #tpu.dot_dimension_numbers<[1], [0], [0], [1], [0, 0, 1, 1], [], []>} : vector<8x16xf32>, vector<16x32xf32>, vector<8x32xf32> -> vector<8x32xf32>
    %c0_3 = arith.constant 0 : index
    %c0_4 = arith.constant 0 : index
    %3 = vector.load %arg5[%c0_3, %c0_4] : memref<1x32xf32, #tpu.memory_space<vmem>>, vector<1x32xf32>
    %4 = vector.broadcast %3 : vector<1x32xf32> to vector<8x32xf32>
    %5 = arith.addf %2, %4 : vector<8x32xf32>
    %cst_5 = arith.constant 0.000000e+00 : f32
    %6 = vector.broadcast %cst_5 : f32 to vector<8x32xf32>
    %7 = arith.maximumf %5, %6 : vector<8x32xf32>
    %c0_6 = arith.constant 0 : index
    %c0_7 = arith.constant 0 : index
    %8 = vector.load %arg3[%c0_6, %c0_7] : memref<32x32xf32, #tpu.memory_space<vmem>>, vector<32x32xf32>
    %cst_8 = arith.constant dense<0.000000e+00> : vector<8x32xf32>
    %9 = tpu.matmul %7, %8, %cst_8 {dimension_numbers = #tpu.dot_dimension_numbers<[1], [0], [0], [1], [0, 0, 1, 1], [], []>} : vector<8x32xf32>, vector<32x32xf32>, vector<8x32xf32> -> vector<8x32xf32>
    %c0_9 = arith.constant 0 : index
    %c0_10 = arith.constant 0 : index
    %10 = vector.load %arg6[%c0_9, %c0_10] : memref<1x32xf32, #tpu.memory_space<vmem>>, vector<1x32xf32>
    %11 = vector.broadcast %10 : vector<1x32xf32> to vector<8x32xf32>
    %12 = arith.addf %9, %11 : vector<8x32xf32>
    %cst_11 = arith.constant 0.000000e+00 : f32
    %13 = vector.broadcast %cst_11 : f32 to vector<8x32xf32>
    %14 = arith.maximumf %12, %13 : vector<8x32xf32>
    %c0_12 = arith.constant 0 : index
    %c0_13 = arith.constant 0 : index
    %15 = vector.load %arg4[%c0_12, %c0_13] : memref<32x4xf32, #tpu.memory_space<vmem>>, vector<32x4xf32>
    %cst_14 = arith.constant dense<0.000000e+00> : vector<8x4xf32>
    %16 = tpu.matmul %14, %15, %cst_14 {dimension_numbers = #tpu.dot_dimension_numbers<[1], [0], [0], [1], [0, 0, 1, 1], [], []>} : vector<8x32xf32>, vector<32x4xf32>, vector<8x4xf32> -> vector<8x4xf32>
    %c0_15 = arith.constant 0 : index
    %c0_16 = arith.constant 0 : index
    %17 = vector.load %arg7[%c0_15, %c0_16] : memref<1x4xf32, #tpu.memory_space<vmem>>, vector<1x4xf32>
    %18 = vector.broadcast %17 : vector<1x4xf32> to vector<8x4xf32>
    %19 = arith.addf %16, %18 : vector<8x4xf32>
    %c0_17 = arith.constant 0 : index
    %c0_18 = arith.constant 0 : index
    %20 = vector.load %arg8[%c0_17, %c0_18] : memref<8x4xf32, #tpu.memory_space<vmem>>, vector<8x4xf32>
    tpu.vector_store %arg8[%c0_17, %c0_18], %19 {strides = array<i32>} : memref<8x4xf32, #tpu.memory_space<vmem>>, vector<8x4xf32>,
    return
  }
  func.func @transform_0(%arg0: i32) -> (i32, i32) {
    %c0_i32 = arith.constant 0 : i32
    %c0_i32_0 = arith.constant 0 : i32
    return %arg0, %c0_i32 : i32, i32
  }
  func.func @transform_1(%arg0: i32) -> (i32, i32) {
    %c0_i32 = arith.constant 0 : i32
    %c0_i32_0 = arith.constant 0 : i32
    %c0_i32_1 = arith.constant 0 : i32
    return %c0_i32, %c0_i32_0 : i32, i32
  }
  func.func @transform_2(%arg0: i32) -> (i32, i32) {
    %c0_i32 = arith.constant 0 : i32
    %c0_i32_0 = arith.constant 0 : i32
    %c0_i32_1 = arith.constant 0 : i32
    return %c0_i32, %c0_i32_0 : i32, i32
  }
  func.func @transform_3(%arg0: i32) -> (i32, i32) {
    %c0_i32 = arith.constant 0 : i32
    %c0_i32_0 = arith.constant 0 : i32
    %c0_i32_1 = arith.constant 0 : i32
    return %c0_i32, %c0_i32_0 : i32, i32
  }
  func.func @transform_4(%arg0: i32) -> (i32, i32) {
    %c0_i32 = arith.constant 0 : i32
    %c0_i32_0 = arith.constant 0 : i32
    %c0_i32_1 = arith.constant 0 : i32
    return %c0_i32, %c0_i32_0 : i32, i32
  }
  func.func @transform_5(%arg0: i32) -> (i32, i32) {
    %c0_i32 = arith.constant 0 : i32
    %c0_i32_0 = arith.constant 0 : i32
    %c0_i32_1 = arith.constant 0 : i32
    return %c0_i32, %c0_i32_0 : i32, i32
  }
  func.func @transform_6(%arg0: i32) -> (i32, i32) {
    %c0_i32 = arith.constant 0 : i32
    %c0_i32_0 = arith.constant 0 : i32
    %c0_i32_1 = arith.constant 0 : i32
    return %c0_i32, %c0_i32_0 : i32, i32
  }
  func.func @transform_7(%arg0: i32) -> (i32, i32) {
    %c0_i32 = arith.constant 0 : i32
    %c0_i32_0 = arith.constant 0 : i32
    return %arg0, %c0_i32 : i32, i32
  }
}

</mosaic_0001>

<llo_original>
// kernel: tpu_custom_call.1
$region0: #{tpu_custom_call.1}
  #allocation0 [shape = 'u32[]', space=smem, size = 0x4, offset = 0x4, fixed_abs, tag = 'smem constant byte address 0x4 - core index']
  #allocation1 [shape = 'u32[144,128]{1,0:T(1,128)}', space=vmem, size = 0x12000, scoped, tag = 'internal scratch']
  %s0 = inlined_call_operand.hbm [shape: f32[8,16], index: 0, kind: input, shape index: {}]
  %s1 = inlined_call_operand.hbm [shape: f32[16,32], index: 1, kind: input, shape index: {}]
  %s2 = inlined_call_operand.vmem [shape: f32[32,32], index: 2, kind: input, shape index: {}]
  %s3 = inlined_call_operand.vmem [shape: f32[32,4], index: 3, kind: input, shape index: {}]
  %s4 = inlined_call_operand.vmem [shape: f32[1,32], index: 4, kind: input, shape index: {}]
  %s5 = inlined_call_operand.vmem [shape: f32[1,32], index: 5, kind: input, shape index: {}]
  %s6 = inlined_call_operand.vmem [shape: f32[1,4], index: 6, kind: input, shape index: {}]
  %s7 = inlined_call_operand.vmem [shape: f32[8,4], index: 7, kind: output, shape index: {}]
  %s8 = sld [smem:[#allocation0]]
  $region46: #{tpu_custom_call.1} parent=0
    _
  %s10 = ssub.s32 1, %s8
  %s11 = scalar_select 0, %s10, %s8
  $region1: #{tpu_custom_call.1} parent=0
    #allocation2 [shape = 'u8[4096]{0}', space=vmem, size = 0x1000, scoped, tag = 'input window, operand 0, single buffered']
    #allocation3 [shape = 's32[1]{0}', space=sflag, size = 0x4, scoped, tag = 'scoped memory for tpu_custom_call.1']
    #allocation4 [shape = 'u8[8192]{0}', space=vmem, size = 0x2000, scoped, tag = 'input window, operand 1, single buffered']
    #allocation5 [shape = 's32[1]{0}', space=sflag, size = 0x4, scoped, tag = 'scoped memory for tpu_custom_call.1']
    %12 = vsyncpa [#allocation3], 0
    %13 = vsyncpa [#allocation5], 0
    // Predicated region
    $region2: #{tpu_custom_call.1} parent=1 // pred_check
      _
    $region3: #{tpu_custom_call.1} parent=1 // pred_check_branch
      %15 = sbr.rel (0) target = $region5
    $region4: #{tpu_custom_call.1} parent=1 // pred_region
      %s17 = ssub.s32 128, 128
      %18 = vsyncadd [#allocation3], %s17
      %s20 = sshll.u32 [#allocation2], 4
      %s21 = int_to_ptr.vmem [resolvable:$true] %s20
      %23 = dma.hbm_to_vmem [thread:$0]  %s0, 128, %s21, [#allocation3]
    $region5: #{tpu_custom_call.1} parent=1 // pred_fallthru
      _
    // Predicated region
    $region6: #{tpu_custom_call.1} parent=1 // pred_check
      _
    $region7: #{tpu_custom_call.1} parent=1 // pred_check_branch
      %25 = sbr.rel (0) target = $region9
    $region8: #{tpu_custom_call.1} parent=1 // pred_region
      %s27 = ssub.s32 256, 256
      %28 = vsyncadd [#allocation5], %s27
      %s29 = sshll.u32 [#allocation4], 4
      %s30 = int_to_ptr.vmem [resolvable:$true] %s29
      %35 = dma.hbm_to_vmem [thread:$0]  %s1, 256, %s30, [#allocation5], 128, 128, 8
    $region9: #{tpu_custom_call.1} parent=1 // pred_fallthru
      _
    // Predicated region
    $region10: #{tpu_custom_call.1} parent=1 // pred_check
      _
    $region11: #{tpu_custom_call.1} parent=1 // pred_check_branch
      %37 = sbr.rel (0) target = $region13
    $region12: #{tpu_custom_call.1} parent=1 // pred_region
      _
    $region13: #{tpu_custom_call.1} parent=1 // pred_fallthru
      _
    // Predicated region
    $region14: #{tpu_custom_call.1} parent=1 // pred_check
      _
    $region15: #{tpu_custom_call.1} parent=1 // pred_check_branch
      %39 = sbr.rel (0) target = $region17
    $region16: #{tpu_custom_call.1} parent=1 // pred_region
      _
    $region17: #{tpu_custom_call.1} parent=1 // pred_fallthru
      _
    // Predicated region
    $region18: #{tpu_custom_call.1} parent=1 // pred_check
      _
    $region19: #{tpu_custom_call.1} parent=1 // pred_check_branch
      %41 = sbr.rel (0) target = $region21
    $region20: #{tpu_custom_call.1} parent=1 // pred_region
      _
    $region21: #{tpu_custom_call.1} parent=1 // pred_fallthru
      _
    // Predicated region
    $region22: #{tpu_custom_call.1} parent=1 // pred_check
      _
    $region23: #{tpu_custom_call.1} parent=1 // pred_check_branch
      %43 = sbr.rel (0) target = $region25
    $region24: #{tpu_custom_call.1} parent=1 // pred_region
      _
    $region25: #{tpu_custom_call.1} parent=1 // pred_fallthru
      _
    // Predicated region
    $region26: #{tpu_custom_call.1} parent=1 // pred_check
      _
    $region27: #{tpu_custom_call.1} parent=1 // pred_check_branch
      %45 = sbr.rel (0) target = $region29
    $region28: #{tpu_custom_call.1} parent=1 // pred_region
      _
    $region29: #{tpu_custom_call.1} parent=1 // pred_fallthru
      _
    // Predicated region
    $region30: #{tpu_custom_call.1} parent=1 // pred_check
      _
    $region31: #{tpu_custom_call.1} parent=1 // pred_check_branch
      %47 = sbr.rel (0) target = $region33
    $region32: #{tpu_custom_call.1} parent=1 // pred_region
      %48 = dma.done [#allocation3], 128
    $region33: #{tpu_custom_call.1} parent=1 // pred_fallthru
      _
    // Predicated region
    $region34: #{tpu_custom_call.1} parent=1 // pred_check
      _
    $region35: #{tpu_custom_call.1} parent=1 // pred_check_branch
      %50 = sbr.rel (0) target = $region37
    $region36: #{tpu_custom_call.1} parent=1 // pred_region
      %51 = dma.done [#allocation5], 256
    $region37: #{tpu_custom_call.1} parent=1 // pred_fallthru
      _
    %v52 = vld [vmem:[#allocation2] sm:$0xff]
    %v53 = vld [vmem:[#allocation4] sm:$0xff]
    %v54 = vld [vmem:[#allocation4 + $0x8] sm:$0xff]
    %v55 = vld [vmem:[%s4] sm:$0x1]
    %v57 = vlaneseq
    %v58 = vshrl.u32 %v57, 7
    %v59 = vsub.s32 0, %v58
    %v60 = vrot.slane %v55, %v59
    %vm62 = vcmask 130048
    %v64 = vsel %vm62, %v52, 0
    %66 = vmatprep.subr.mxu0 0.0
    %67 = vmatpush1.msra.mxu0 0.0
    %68 = vmatprep.subr.mxu0 0.0
    %69 = vmatpush1.msra.mxu0 0.0
    %70 = vmatprep.subr.mxu0 0.0
    %71 = vmatpush1.msra.mxu0 0.0
    %72 = vmatprep.subr.mxu0 0.0
    %73 = vmatpush1.msra.mxu0 0.0
    %74 = vmatprep.subr.mxu0 0.0
    %75 = vmatpush1.msra.mxu0 0.0
    %76 = vmatprep.subr.mxu0 0.0
    %77 = vmatpush1.msra.mxu0 0.0
    %78 = vmatprep.subr.mxu0 0.0
    %79 = vmatpush1.msra.mxu0 0.0
    %80 = vmatprep.subr.mxu0 0.0
    %81 = vmatpush1.msra.mxu0 0.0
    %82 = vmatprep.subr.mxu0 0.0
    %83 = vmatpush1.msra.mxu0 0.0
    %84 = vmatprep.subr.mxu0 0.0
    %85 = vmatpush1.msra.mxu0 0.0
    %86 = vmatprep.subr.mxu0 0.0
    %87 = vmatpush1.msra.mxu0 0.0
    %88 = vmatprep.subr.mxu0 0.0
    %89 = vmatpush1.msra.mxu0 0.0
    %90 = vmatprep.subr.mxu0 0.0
    %91 = vmatpush1.msra.mxu0 0.0
    %92 = vmatprep.subr.mxu0 0.0
    %93 = vmatpush1.msra.mxu0 0.0
    %94 = vmatprep.subr.mxu0 0.0
    %95 = vmatpush1.msra.mxu0 %v54
    %96 = vmatprep.subr.mxu0 0.0
    %97 = vmatpush1.msra.mxu0 %v53
    %98 = vmatprep.subr.mxu0 0.0
    %99 = vmatpush2.msra.mxu0 0.0
    %100 = vmatprep.subr.mxu0 0.0
    %101 = vmatpush2.msra.mxu0 0.0
    %102 = vmatprep.subr.mxu0 0.0
    %103 = vmatpush2.msra.mxu0 0.0
    %104 = vmatprep.subr.mxu0 0.0
    %105 = vmatpush2.msra.mxu0 0.0
    %106 = vmatprep.subr.mxu0 0.0
    %107 = vmatpush2.msra.mxu0 0.0
    %108 = vmatprep.subr.mxu0 0.0
    %109 = vmatpush2.msra.mxu0 0.0
    %110 = vmatprep.subr.mxu0 0.0
    %111 = vmatpush2.msra.mxu0 0.0
    %112 = vmatprep.subr.mxu0 0.0
    %113 = vmatpush2.msra.mxu0 0.0
    %114 = vmatprep.subr.mxu0 0.0
    %115 = vmatpush2.msra.mxu0 0.0
    %116 = vmatprep.subr.mxu0 0.0
    %117 = vmatpush2.msra.mxu0 0.0
    %118 = vmatprep.subr.mxu0 0.0
    %119 = vmatpush2.msra.mxu0 0.0
    %120 = vmatprep.subr.mxu0 0.0
    %121 = vmatpush2.msra.mxu0 0.0
    %122 = vmatprep.subr.mxu0 0.0
    %123 = vmatpush2.msra.mxu0 0.0
    %124 = vmatprep.subr.mxu0 0.0
    %125 = vmatpush2.msra.mxu0 0.0
    %126 = vmatprep.subr.mxu0 0.0
    %127 = vmatpush2.msra.mxu0 0.0
    %128 = vmatprep.subr.mxu0 0.0
    %129 = vmatpush2.msra.mxu0 0.0
    %130 = vmatprep.mubr.f32.mxu0 0.0
    %131 = vmatmul.mubr.f32.gmra.mxu0 %v64
    %v132 = vpop.f32.mrf.mxu0
    %v133 = vadd.f32 %v60, %v132
    %v134 = vpop.f32.mrf.mxu0
    %135 = vdwg.mxu0
    %v136 = vmax.f32 %v133, 0.0
    %v137 = vld [vmem:[%s2] sm:$0xff]
    %v138 = vld [vmem:[%s2 + $0x8] sm:$0xff]
    %v139 = vld [vmem:[%s2 + $0x10] sm:$0xff]
    %v140 = vld [vmem:[%s2 + $0x18] sm:$0xff]
    %v141 = vld [vmem:[%s5] sm:$0x1]
    %v143 = vlaneseq
    %v144 = vshrl.u32 %v143, 7
    %v145 = vsub.s32 0, %v144
    %v146 = vrot.slane %v141, %v145
    %vm148 = vcmask 261120
    %v150 = vsel %vm148, %v136, 0
    %152 = vmatprep.subr.mxu0 0.0
    %153 = vmatpush1.msra.mxu0 0.0
    %154 = vmatprep.subr.mxu0 0.0
    %155 = vmatpush1.msra.mxu0 0.0
    %156 = vmatprep.subr.mxu0 0.0
    %157 = vmatpush1.msra.mxu0 0.0
    %158 = vmatprep.subr.mxu0 0.0
    %159 = vmatpush1.msra.mxu0 0.0
    %160 = vmatprep.subr.mxu0 0.0
    %161 = vmatpush1.msra.mxu0 0.0
    %162 = vmatprep.subr.mxu0 0.0
    %163 = vmatpush1.msra.mxu0 0.0
    %164 = vmatprep.subr.mxu0 0.0
    %165 = vmatpush1.msra.mxu0 0.0
    %166 = vmatprep.subr.mxu0 0.0
    %167 = vmatpush1.msra.mxu0 0.0
    %168 = vmatprep.subr.mxu0 0.0
    %169 = vmatpush1.msra.mxu0 0.0
    %170 = vmatprep.subr.mxu0 0.0
    %171 = vmatpush1.msra.mxu0 0.0
    %172 = vmatprep.subr.mxu0 0.0
    %173 = vmatpush1.msra.mxu0 0.0
    %174 = vmatprep.subr.mxu0 0.0
    %175 = vmatpush1.msra.mxu0 0.0
    %176 = vmatprep.subr.mxu0 0.0
    %177 = vmatpush1.msra.mxu0 %v140
    %178 = vmatprep.subr.mxu0 0.0
    %179 = vmatpush1.msra.mxu0 %v139
    %180 = vmatprep.subr.mxu0 0.0
    %181 = vmatpush1.msra.mxu0 %v138
    %182 = vmatprep.subr.mxu0 0.0
    %183 = vmatpush1.msra.mxu0 %v137
    %184 = vmatprep.subr.mxu0 0.0
    %185 = vmatpush2.msra.mxu0 0.0
    %186 = vmatprep.subr.mxu0 0.0
    %187 = vmatpush2.msra.mxu0 0.0
    %188 = vmatprep.subr.mxu0 0.0
    %189 = vmatpush2.msra.mxu0 0.0
    %190 = vmatprep.subr.mxu0 0.0
    %191 = vmatpush2.msra.mxu0 0.0
    %192 = vmatprep.subr.mxu0 0.0
    %193 = vmatpush2.msra.mxu0 0.0
    %194 = vmatprep.subr.mxu0 0.0
    %195 = vmatpush2.msra.mxu0 0.0
    %196 = vmatprep.subr.mxu0 0.0
    %197 = vmatpush2.msra.mxu0 0.0
    %198 = vmatprep.subr.mxu0 0.0
    %199 = vmatpush2.msra.mxu0 0.0
    %200 = vmatprep.subr.mxu0 0.0
    %201 = vmatpush2.msra.mxu0 0.0
    %202 = vmatprep.subr.mxu0 0.0
    %203 = vmatpush2.msra.mxu0 0.0
    %204 = vmatprep.subr.mxu0 0.0
    %205 = vmatpush2.msra.mxu0 0.0
    %206 = vmatprep.subr.mxu0 0.0
    %207 = vmatpush2.msra.mxu0 0.0
    %208 = vmatprep.subr.mxu0 0.0
    %209 = vmatpush2.msra.mxu0 0.0
    %210 = vmatprep.subr.mxu0 0.0
    %211 = vmatpush2.msra.mxu0 0.0
    %212 = vmatprep.subr.mxu0 0.0
    %213 = vmatpush2.msra.mxu0 0.0
    %214 = vmatprep.subr.mxu0 0.0
    %215 = vmatpush2.msra.mxu0 0.0
    %216 = vmatprep.mubr.f32.mxu0 0.0
    %217 = vmatmul.mubr.f32.gmra.mxu0 %v150
    %v218 = vpop.f32.mrf.mxu0
    %v219 = vadd.f32 %v146, %v218
    %v220 = vpop.f32.mrf.mxu0
    %221 = vdwg.mxu0
    %v222 = vmax.f32 %v219, 0.0
    %v223 = vld [vmem:[%s3] sm:$0xff]
    %v224 = vld [vmem:[%s3 + $0x8] sm:$0xff]
    %v225 = vld [vmem:[%s3 + $0x10] sm:$0xff]
    %v226 = vld [vmem:[%s3 + $0x18] sm:$0xff]
    %v227 = vld [vmem:[%s6] sm:$0x1]
    %v229 = vlaneseq
    %v230 = vshrl.u32 %v229, 7
    %v231 = vsub.s32 0, %v230
    %v232 = vrot.slane %v227, %v231
    %v235 = vsel %vm148, %v222, 0
    %237 = vmatprep.subr.mxu0 0.0
    %238 = vmatpush1.msra.mxu0 0.0
    %239 = vmatprep.subr.mxu0 0.0
    %240 = vmatpush1.msra.mxu0 0.0
    %241 = vmatprep.subr.mxu0 0.0
    %242 = vmatpush1.msra.mxu0 0.0
    %243 = vmatprep.subr.mxu0 0.0
    %244 = vmatpush1.msra.mxu0 0.0
    %245 = vmatprep.subr.mxu0 0.0
    %246 = vmatpush1.msra.mxu0 0.0
    %247 = vmatprep.subr.mxu0 0.0
    %248 = vmatpush1.msra.mxu0 0.0
    %249 = vmatprep.subr.mxu0 0.0
    %250 = vmatpush1.msra.mxu0 0.0
    %251 = vmatprep.subr.mxu0 0.0
    %252 = vmatpush1.msra.mxu0 0.0
    %253 = vmatprep.subr.mxu0 0.0
    %254 = vmatpush1.msra.mxu0 0.0
    %255 = vmatprep.subr.mxu0 0.0
    %256 = vmatpush1.msra.mxu0 0.0
    %257 = vmatprep.subr.mxu0 0.0
    %258 = vmatpush1.msra.mxu0 0.0
    %259 = vmatprep.subr.mxu0 0.0
    %260 = vmatpush1.msra.mxu0 0.0
    %261 = vmatprep.subr.mxu0 0.0
    %262 = vmatpush1.msra.mxu0 %v226
    %263 = vmatprep.subr.mxu0 0.0
    %264 = vmatpush1.msra.mxu0 %v225
    %265 = vmatprep.subr.mxu0 0.0
    %266 = vmatpush1.msra.mxu0 %v224
    %267 = vmatprep.subr.mxu0 0.0
    %268 = vmatpush1.msra.mxu0 %v223
    %269 = vmatprep.subr.mxu0 0.0
    %270 = vmatpush2.msra.mxu0 0.0
    %271 = vmatprep.subr.mxu0 0.0
    %272 = vmatpush2.msra.mxu0 0.0
    %273 = vmatprep.subr.mxu0 0.0
    %274 = vmatpush2.msra.mxu0 0.0
    %275 = vmatprep.subr.mxu0 0.0
    %276 = vmatpush2.msra.mxu0 0.0
    %277 = vmatprep.subr.mxu0 0.0
    %278 = vmatpush2.msra.mxu0 0.0
    %279 = vmatprep.subr.mxu0 0.0
    %280 = vmatpush2.msra.mxu0 0.0
    %281 = vmatprep.subr.mxu0 0.0
    %282 = vmatpush2.msra.mxu0 0.0
    %283 = vmatprep.subr.mxu0 0.0
    %284 = vmatpush2.msra.mxu0 0.0
    %285 = vmatprep.subr.mxu0 0.0
    %286 = vmatpush2.msra.mxu0 0.0
    %287 = vmatprep.subr.mxu0 0.0
    %288 = vmatpush2.msra.mxu0 0.0
    %289 = vmatprep.subr.mxu0 0.0
    %290 = vmatpush2.msra.mxu0 0.0
    %291 = vmatprep.subr.mxu0 0.0
    %292 = vmatpush2.msra.mxu0 0.0
    %293 = vmatprep.subr.mxu0 0.0
    %294 = vmatpush2.msra.mxu0 0.0
    %295 = vmatprep.subr.mxu0 0.0
    %296 = vmatpush2.msra.mxu0 0.0
    %297 = vmatprep.subr.mxu0 0.0
    %298 = vmatpush2.msra.mxu0 0.0
    %299 = vmatprep.subr.mxu0 0.0
    %300 = vmatpush2.msra.mxu0 0.0
    %301 = vmatprep.mubr.f32.mxu0 0.0
    %302 = vmatmul.mubr.f32.gmra.mxu0 %v235
    %v303 = vpop.f32.mrf.mxu0
    %v304 = vadd.f32 %v232, %v303
    %v305 = vpop.f32.mrf.mxu0
    %306 = vdwg.mxu0
    %vm307 = vcmask 31744
    %308 = vst.msk [vmem:[%s7] sm:$0xff] %vm307, %v304
    // Predicated region
    $region38: #{tpu_custom_call.1} parent=1 // pred_check
      _
    $region39: #{tpu_custom_call.1} parent=1 // pred_check_branch
      %310 = sbr.rel (0) target = $region41
    $region40: #{tpu_custom_call.1} parent=1 // pred_region
      _
    $region41: #{tpu_custom_call.1} parent=1 // pred_fallthru
      _
    // Predicated region
    $region42: #{tpu_custom_call.1} parent=1 // pred_check
      _
    $region43: #{tpu_custom_call.1} parent=1 // pred_check_branch
      %312 = sbr.rel (0) target = $region45
    $region44: #{tpu_custom_call.1} parent=1 // pred_region
      _
    $region45: #{tpu_custom_call.1} parent=1 // pred_fallthru
      _
    %313 = vsyncpa [#allocation3], 1
    %314 = vsyncpa [#allocation5], 1

</llo_original>
